<compile_context>
chip_gen: v7x
topology: tpu7x:2x2x1
jax: 0.10.0
libtpu: 0.0.40
codegen_flags: <defaults>
</compile_context>

<pallas_src>
import functools

import jax
import jax.numpy as jnp
from jax.experimental import pallas as pl
from jax.experimental.pallas import tpu as pltpu

LN_EPS = 1e-5  # nn.LayerNorm default

_ROW_TILE_TARGET = 512          # rows per tile (multiple of 8 and of 128)
_H_TILE_TARGET = 512            # output-feature tile (multiple of 128)
_VMEM_TILE_BUDGET = 32 * 1024 * 1024   # conservative: fits every generation
_VMEM_LIMIT_BYTES = 56 * 1024 * 1024   # > default scoped limit, < v7x physical


def _round_up(x, m):
    return ((x + m - 1) // m) * m


def _pick_tiles(R, D, H, x_bytes, w_bytes, o_bytes):
    """Pick (tm, tn) that respect the (8,128) tiling rules and a VMEM budget."""
    tm = min(_ROW_TILE_TARGET, _round_up(R, 8))
    # tn must be a multiple of 128 or equal to the full H.
    tn = H if H <= _H_TILE_TARGET else _H_TILE_TARGET

    def vmem_est(tm_, tn_):
        # Double-buffered pipeline copies (x, w, b, out) + f32 LN intermediates.
        return (2 * tm_ * D * x_bytes          # x tile
                + 2 * D * tn_ * w_bytes        # weight tile
                + 2 * tn_ * 4                  # bias tile (f32)
                + 2 * tm_ * tn_ * o_bytes      # output tile
                + 2 * tm_ * D * 4)             # f32 x / centered intermediates

    while vmem_est(tm, tn) > _VMEM_TILE_BUDGET and tm > 8:
        tm = max(8, tm // 2)
    while vmem_est(tm, tn) > _VMEM_TILE_BUDGET and H > _H_TILE_TARGET and tn > 128:
        tn = max(128, tn // 2)
    return tm, tn


def _prenorm_linear_kernel(x_ref, w_ref, b_ref, o_ref):
    # x_ref: (TM, D) rows;  w_ref: (D, TN) with the LN affine already folded in;
    # b_ref: (1, TN) f32 effective bias;  o_ref: (TM, TN).
    x = x_ref[...].astype(jnp.float32)

    # LayerNorm statistics in f32 (biased variance, like PyTorch).
    mean = jnp.mean(x, axis=-1, keepdims=True)
    centered = x - mean
    var = jnp.mean(centered * centered, axis=-1, keepdims=True)

    # Normalize and cast straight to the MXU input dtype (bf16 weight -> bf16 y);
    # only the statistics and the matmul accumulator stay in f32.
    y = (centered * jax.lax.rsqrt(var + LN_EPS)).astype(w_ref.dtype)

    acc = jnp.dot(y, w_ref[...], preferred_element_type=jnp.float32)
    o_ref[...] = (acc + b_ref[...]).astype(o_ref.dtype)


@jax.jit
def prenorm_linear(x, gamma, beta, w, b):
    """PreNorm(dim, Linear(dim, hidden)) forward.

    x:     (B, S, D)
    gamma: (D,), beta: (D,)   LayerNorm weight / bias
    w:     (D, H), b: (H,)    wrapped Linear weight (already transposed) / bias
    returns (B, S, H)
    """
    B, S, D = x.shape
    H = w.shape[1]
    R = B * S
    x2 = x.reshape(R, D)

    # Fold the LayerNorm affine into the Linear (mathematically identical):
    #   (xn * gamma + beta) @ W + b  ==  xn @ (gamma[:,None] * W) + (beta @ W + b)
    w32 = w.astype(jnp.float32)
    w_eff = (gamma.astype(jnp.float32)[:, None] * w32).astype(w.dtype)
    b_eff = (beta.astype(jnp.float32) @ w32 + b.astype(jnp.float32)).reshape(1, H)

    tm, tn = _pick_tiles(R, D, H,
                         x.dtype.itemsize, w_eff.dtype.itemsize, x.dtype.itemsize)

    # Grid: H tiles outer, row tiles inner.  The weight block index only depends
    # on the outer axis, so it stays resident across the inner row loop (no
    # re-DMA between inner steps); both axes are megacore-parallel.
    grid = (pl.cdiv(H, tn), pl.cdiv(R, tm))

    out2 = pl.pallas_call(
        _prenorm_linear_kernel,
        out_shape=jax.ShapeDtypeStruct((R, H), x.dtype),
        grid_spec=pltpu.PrefetchScalarGridSpec(
            num_scalar_prefetch=0,
            grid=grid,
            in_specs=[
                pl.BlockSpec((tm, D), lambda j, i: (i, 0)),   # x rows
                pl.BlockSpec((D, tn), lambda j, i: (0, j)),   # folded weight
                pl.BlockSpec((1, tn), lambda j, i: (0, j)),   # folded bias (f32)
            ],
            out_specs=pl.BlockSpec((tm, tn), lambda j, i: (i, j)),
        ),
        compiler_params=pltpu.CompilerParams(
            dimension_semantics=("parallel", "parallel"),
            vmem_limit_bytes=_VMEM_LIMIT_BYTES),
    )(x2, w_eff, b_eff)

    return out2.reshape(B, S, H)


def reference(x, gamma, beta, w, b):
    xf = x.astype(jnp.float32)
    mean = jnp.mean(xf, axis=-1, keepdims=True)
    var = jnp.mean((xf - mean) ** 2, axis=-1, keepdims=True)
    y = (xf - mean) / jnp.sqrt(var + LN_EPS) * gamma + beta
    return (y @ w + b).astype(x.dtype)


if __name__ == "__main__":
    # Small but lane-dense shapes: batch=2, seq=8, dim=128, hidden=256.
    B, S, D, H = 2, 8, 128, 256
    key = jax.random.PRNGKey(0)
    kx, kw, kb, kg, kbt = jax.random.split(key, 5)

    x = jax.random.normal(kx, (B, S, D), dtype=jnp.float32)

    # Deterministic synthetic parameters; non-trivial affine exercises the fold.
    gamma = 1.0 + 0.1 * jax.random.normal(kg, (D,), jnp.float32)
    beta = 0.1 * jax.random.normal(kbt, (D,), jnp.float32)
    bound = 1.0 / jnp.sqrt(D)
    w = jax.random.uniform(kw, (D, H), jnp.float32, -bound, bound)
    b = jax.random.uniform(kb, (H,), jnp.float32, -bound, bound)

    out = prenorm_linear(x, gamma, beta, w, b)
    jax.block_until_ready(out)

    ref = reference(x, gamma, beta, w, b)
    assert out.shape == (B, S, H)
    assert jnp.allclose(out, ref, atol=1e-4, rtol=1e-4), "mismatch vs reference"

    print("KERNEL_OK")
</pallas_src>

<mosaic_0001>
module attributes {stable_mosaic.version = 11 : i64} {
  func.func @_prenorm_linear_kernel(%arg0: i32, %arg1: i32, %arg2: memref<16x128xf32, #tpu.memory_space<vmem>>, %arg3: memref<128x256xf32, #tpu.memory_space<vmem>>, %arg4: memref<1x256xf32, #tpu.memory_space<vmem>>, %arg5: memref<16x256xf32, #tpu.memory_space<vmem>>) attributes {dimension_semantics = [#tpu.dimension_semantics<parallel>, #tpu.dimension_semantics<parallel>], iteration_bounds = array<i64: 1, 1>, scalar_prefetch = 0 : i64, scratch_operands = 0 : i64, tpu.core_type = #tpu.core_type<tc>, window_params = [{transform_indices = @transform_0, window_bounds = array<i64: 16, 128>}, {transform_indices = @transform_1, window_bounds = array<i64: 128, 256>}, {transform_indices = @transform_2, window_bounds = array<i64: 1, 256>}, {transform_indices = @transform_3, window_bounds = array<i64: 16, 256>}]} {
    %c0 = arith.constant 0 : index
    %c0_0 = arith.constant 0 : index
    %0 = vector.load %arg2[%c0, %c0_0] : memref<16x128xf32, #tpu.memory_space<vmem>>, vector<16x128xf32>
    %cst = arith.constant dense<0.000000e+00> : vector<16xf32>
    %1 = vector.multi_reduction <add>, %0, %cst [1] : vector<16x128xf32> to vector<16xf32>
    %2 = vector.shape_cast %1 : vector<16xf32> to vector<16x1xf32>
    %cst_1 = arith.constant 1.280000e+02 : f32
    %3 = vector.broadcast %cst_1 : f32 to vector<16x1xf32>
    %4 = arith.divf %2, %3 : vector<16x1xf32>
    %5 = vector.broadcast %4 : vector<16x1xf32> to vector<16x128xf32>
    %6 = arith.subf %0, %5 : vector<16x128xf32>
    %7 = arith.mulf %6, %6 : vector<16x128xf32>
    %cst_2 = arith.constant dense<0.000000e+00> : vector<16xf32>
    %8 = vector.multi_reduction <add>, %7, %cst_2 [1] : vector<16x128xf32> to vector<16xf32>
    %9 = vector.shape_cast %8 : vector<16xf32> to vector<16x1xf32>
    %cst_3 = arith.constant 1.280000e+02 : f32
    %10 = vector.broadcast %cst_3 : f32 to vector<16x1xf32>
    %11 = arith.divf %9, %10 : vector<16x1xf32>
    %cst_4 = arith.constant 9.99999974E-6 : f32
    %12 = vector.broadcast %cst_4 : f32 to vector<16x1xf32>
    %13 = arith.addf %11, %12 : vector<16x1xf32>
    %14 = math.rsqrt %13 : vector<16x1xf32>
    %15 = vector.broadcast %14 : vector<16x1xf32> to vector<16x128xf32>
    %16 = arith.mulf %6, %15 : vector<16x128xf32>
    %c0_5 = arith.constant 0 : index
    %c0_6 = arith.constant 0 : index
    %17 = vector.load %arg3[%c0_5, %c0_6] : memref<128x256xf32, #tpu.memory_space<vmem>>, vector<128x256xf32>
    %cst_7 = arith.constant dense<0.000000e+00> : vector<16x256xf32>
    %18 = tpu.matmul %16, %17, %cst_7 {dimension_numbers = #tpu.dot_dimension_numbers<[1], [0], [0], [1], [0, 0, 1, 1], [], []>} : vector<16x128xf32>, vector<128x256xf32>, vector<16x256xf32> -> vector<16x256xf32>
    %c0_8 = arith.constant 0 : index
    %c0_9 = arith.constant 0 : index
    %19 = vector.load %arg4[%c0_8, %c0_9] : memref<1x256xf32, #tpu.memory_space<vmem>>, vector<1x256xf32>
    %20 = vector.broadcast %19 : vector<1x256xf32> to vector<16x256xf32>
    %21 = arith.addf %18, %20 : vector<16x256xf32>
    %c0_10 = arith.constant 0 : index
    %c0_11 = arith.constant 0 : index
    %22 = vector.load %arg5[%c0_10, %c0_11] : memref<16x256xf32, #tpu.memory_space<vmem>>, vector<16x256xf32>
    tpu.vector_store %arg5[%c0_10, %c0_11], %21 {strides = array<i32>} : memref<16x256xf32, #tpu.memory_space<vmem>>, vector<16x256xf32>,
    return
  }
  func.func @transform_0(%arg0: i32, %arg1: i32) -> (i32, i32) {
    %c0_i32 = arith.constant 0 : i32
    %c0_i32_0 = arith.constant 0 : i32
    return %arg1, %c0_i32 : i32, i32
  }
  func.func @transform_1(%arg0: i32, %arg1: i32) -> (i32, i32) {
    %c0_i32 = arith.constant 0 : i32
    %c0_i32_0 = arith.constant 0 : i32
    return %c0_i32, %arg0 : i32, i32
  }
  func.func @transform_2(%arg0: i32, %arg1: i32) -> (i32, i32) {
    %c0_i32 = arith.constant 0 : i32
    %c0_i32_0 = arith.constant 0 : i32
    return %c0_i32, %arg0 : i32, i32
  }
  func.func @transform_3(%arg0: i32, %arg1: i32) -> (i32, i32) {
    %c0_i32 = arith.constant 0 : i32
    return %arg1, %arg0 : i32, i32
  }
}

</mosaic_0001>

<llo_original>
// kernel: prenorm_linear.1
$region0: #{prenorm_linear.1}
  #allocation0 [shape = 'u32[]', space=smem, size = 0x4, offset = 0x4, fixed_abs, tag = 'smem constant byte address 0x4 - core index']
  #allocation1 [shape = 'u32[144,128]{1,0:T(1,128)}', space=vmem, size = 0x12000, scoped, tag = 'internal scratch']
  %s0 = inlined_call_operand.vmem [shape: f32[16,128], index: 0, kind: input, shape index: {}]
  %s1 = inlined_call_operand.vmem [shape: f32[128,256], index: 1, kind: input, shape index: {}]
  %s2 = inlined_call_operand.vmem [shape: f32[1,256], index: 2, kind: input, shape index: {}]
  %s3 = inlined_call_operand.hbm [shape: f32[16,256], index: 3, kind: output, shape index: {}]
  %s4 = sld [smem:[#allocation0]]
  $region22: #{prenorm_linear.1} parent=0
    _
  %s6 = ssub.s32 1, %s4
  %s7 = scalar_select 0, %s6, %s4
  $region1: #{prenorm_linear.1} parent=0
    #allocation2 [shape = 'u8[16384]{0}', space=vmem, size = 0x4000, scoped, tag = 'output window, operand 0, single buffered']
    #allocation3 [shape = 's32[1]{0}', space=sflag, size = 0x4, scoped, tag = 'scoped memory for prenorm_linear.1']
    %8 = vsyncpa [#allocation3], 0
    // Predicated region
    $region2: #{prenorm_linear.1} parent=1 // pred_check
      _
    $region3: #{prenorm_linear.1} parent=1 // pred_check_branch
      %10 = sbr.rel (0) target = $region5
    $region4: #{prenorm_linear.1} parent=1 // pred_region
      _
    $region5: #{prenorm_linear.1} parent=1 // pred_fallthru
      _
    // Predicated region
    $region6: #{prenorm_linear.1} parent=1 // pred_check
      _
    $region7: #{prenorm_linear.1} parent=1 // pred_check_branch
      %12 = sbr.rel (0) target = $region9
    $region8: #{prenorm_linear.1} parent=1 // pred_region
      _
    $region9: #{prenorm_linear.1} parent=1 // pred_fallthru
      _
    // Predicated region
    $region10: #{prenorm_linear.1} parent=1 // pred_check
      _
    $region11: #{prenorm_linear.1} parent=1 // pred_check_branch
      %14 = sbr.rel (0) target = $region13
    $region12: #{prenorm_linear.1} parent=1 // pred_region
      _
    $region13: #{prenorm_linear.1} parent=1 // pred_fallthru
      _
    %v15 = vld [vmem:[%s0] sm:$0xff]
    %v16 = vld [vmem:[%s0 + $0x8] sm:$0xff]
    %17 = vadd.xlane.f32.xlu0 %v15
    %v18 = vpop.xlane.xlu0 %17
    %19 = vadd.xlane.f32.xlu0 %v16
    %v20 = vpop.xlane.xlu0 %19
    %v21 = vrcp.pop 128.0
    %v22 = vmul.f32 %v18, %v21
    %v23 = vmul.f32 %v20, %v21
    %v24 = vsub.f32 %v15, %v22
    %v25 = vsub.f32 %v16, %v23
    %v26 = vmul.f32 %v24, %v24
    %v27 = vmul.f32 %v25, %v25
    %28 = vadd.xlane.f32.xlu0 %v26
    %v29 = vpop.xlane.xlu0 %28
    %30 = vadd.xlane.f32.xlu0 %v27
    %v31 = vpop.xlane.xlu0 %30
    %v32 = vmul.f32 %v29, %v21
    %v33 = vmul.f32 %v31, %v21
    %v34 = vadd.f32 %v32, 1e-05
    %v35 = vadd.f32 %v33, 1e-05
    %v36 = vrsqrt.pop %v34
    %v37 = vrsqrt.pop %v35
    %v38 = vmul.f32 %v24, %v36
    %v39 = vmul.f32 %v25, %v37
    %v40 = vld [vmem:[%s1] sm:$0xff]
    %v41 = vld [vmem:[%s1 + $0x8] sm:$0xff]
    %v42 = vld [vmem:[%s1 + $0x10] sm:$0xff]
    %v43 = vld [vmem:[%s1 + $0x18] sm:$0xff]
    %v44 = vld [vmem:[%s1 + $0x20] sm:$0xff]
    %v45 = vld [vmem:[%s1 + $0x28] sm:$0xff]
    %v46 = vld [vmem:[%s1 + $0x30] sm:$0xff]
    %v47 = vld [vmem:[%s1 + $0x38] sm:$0xff]
    %v48 = vld [vmem:[%s1 + $0x40] sm:$0xff]
    %v49 = vld [vmem:[%s1 + $0x48] sm:$0xff]
    %v50 = vld [vmem:[%s1 + $0x50] sm:$0xff]
    %v51 = vld [vmem:[%s1 + $0x58] sm:$0xff]
    %v52 = vld [vmem:[%s1 + $0x60] sm:$0xff]
    %v53 = vld [vmem:[%s1 + $0x68] sm:$0xff]
    %v54 = vld [vmem:[%s1 + $0x70] sm:$0xff]
    %v55 = vld [vmem:[%s1 + $0x78] sm:$0xff]
    %v56 = vld [vmem:[%s1 + $0x80] sm:$0xff]
    %v57 = vld [vmem:[%s1 + $0x88] sm:$0xff]
    %v58 = vld [vmem:[%s1 + $0x90] sm:$0xff]
    %v59 = vld [vmem:[%s1 + $0x98] sm:$0xff]
    %v60 = vld [vmem:[%s1 + $0xa0] sm:$0xff]
    %v61 = vld [vmem:[%s1 + $0xa8] sm:$0xff]
    %v62 = vld [vmem:[%s1 + $0xb0] sm:$0xff]
    %v63 = vld [vmem:[%s1 + $0xb8] sm:$0xff]
    %v64 = vld [vmem:[%s1 + $0xc0] sm:$0xff]
    %v65 = vld [vmem:[%s1 + $0xc8] sm:$0xff]
    %v66 = vld [vmem:[%s1 + $0xd0] sm:$0xff]
    %v67 = vld [vmem:[%s1 + $0xd8] sm:$0xff]
    %v68 = vld [vmem:[%s1 + $0xe0] sm:$0xff]
    %v69 = vld [vmem:[%s1 + $0xe8] sm:$0xff]
    %v70 = vld [vmem:[%s1 + $0xf0] sm:$0xff]
    %v71 = vld [vmem:[%s1 + $0xf8] sm:$0xff]
    %v72 = vld [vmem:[%s2] sm:$0x3]
    %v74 = vlaneseq
    %v75 = vshrl.u32 %v74, 7
    %v76 = vsub.s32 0, %v75
    %v77 = vrot.slane %v72, %v76
    %v78 = vlaneseq
    %v79 = vshrl.u32 %v78, 7
    %v80 = vsub.s32 1, %v79
    %v81 = vrot.slane %v72, %v80
    %84 = vmatprep.subr.mxu0 %v41
    %85 = vmatpush1.msra.mxu0 %v40
    %86 = vmatprep.subr.mxu0 %v43
    %87 = vmatpush1.msra.mxu0 %v42
    %88 = vmatprep.subr.mxu0 %v45
    %89 = vmatpush1.msra.mxu0 %v44
    %90 = vmatprep.subr.mxu0 %v47
    %91 = vmatpush1.msra.mxu0 %v46
    %92 = vmatprep.subr.mxu0 %v49
    %93 = vmatpush1.msra.mxu0 %v48
    %94 = vmatprep.subr.mxu0 %v51
    %95 = vmatpush1.msra.mxu0 %v50
    %96 = vmatprep.subr.mxu0 %v53
    %97 = vmatpush1.msra.mxu0 %v52
    %98 = vmatprep.subr.mxu0 %v55
    %99 = vmatpush1.msra.mxu0 %v54
    %100 = vmatprep.subr.mxu0 %v57
    %101 = vmatpush1.msra.mxu0 %v56
    %102 = vmatprep.subr.mxu0 %v59
    %103 = vmatpush1.msra.mxu0 %v58
    %104 = vmatprep.subr.mxu0 %v61
    %105 = vmatpush1.msra.mxu0 %v60
    %106 = vmatprep.subr.mxu0 %v63
    %107 = vmatpush1.msra.mxu0 %v62
    %108 = vmatprep.subr.mxu0 %v65
    %109 = vmatpush1.msra.mxu0 %v64
    %110 = vmatprep.subr.mxu0 %v67
    %111 = vmatpush1.msra.mxu0 %v66
    %112 = vmatprep.subr.mxu0 %v69
    %113 = vmatpush1.msra.mxu0 %v68
    %114 = vmatprep.subr.mxu0 %v71
    %115 = vmatpush1.msra.mxu0 %v70
    %116 = vmatprep.subr.mxu0 0.0
    %117 = vmatpush1.msra.mxu0 0.0
    %118 = vmatprep.subr.mxu0 0.0
    %119 = vmatpush1.msra.mxu0 0.0
    %120 = vmatprep.subr.mxu0 0.0
    %121 = vmatpush1.msra.mxu0 0.0
    %122 = vmatprep.subr.mxu0 0.0
    %123 = vmatpush1.msra.mxu0 0.0
    %124 = vmatprep.subr.mxu0 0.0
    %125 = vmatpush1.msra.mxu0 0.0
    %126 = vmatprep.subr.mxu0 0.0
    %127 = vmatpush1.msra.mxu0 0.0
    %128 = vmatprep.subr.mxu0 0.0
    %129 = vmatpush1.msra.mxu0 0.0
    %130 = vmatprep.subr.mxu0 0.0
    %131 = vmatpush1.msra.mxu0 0.0
    %132 = vmatprep.subr.mxu0 0.0
    %133 = vmatpush1.msra.mxu0 0.0
    %134 = vmatprep.subr.mxu0 0.0
    %135 = vmatpush1.msra.mxu0 0.0
    %136 = vmatprep.subr.mxu0 0.0
    %137 = vmatpush1.msra.mxu0 0.0
    %138 = vmatprep.subr.mxu0 0.0
    %139 = vmatpush1.msra.mxu0 0.0
    %140 = vmatprep.subr.mxu0 0.0
    %141 = vmatpush1.msra.mxu0 0.0
    %142 = vmatprep.subr.mxu0 0.0
    %143 = vmatpush1.msra.mxu0 0.0
    %144 = vmatprep.subr.mxu0 0.0
    %145 = vmatpush1.msra.mxu0 0.0
    %146 = vmatprep.subr.mxu0 0.0
    %147 = vmatpush1.msra.mxu0 0.0
    %148 = vmatprep.mubr.f32.mxu0 0.0
    %149 = vmatmul.mubr.f32.gmra.mrb[0].mxu0 %v38
    %v150 = vpop.f32.mrb[0].mxu0
    %v151 = vadd.f32 %v77, %v150
    %v152 = vpop.f32.mrb[0].mxu0
    %v153 = vadd.f32 %v81, %v152
    %154 = vmatprep.mubr.f32.mxu0 0.0
    %155 = vmatmul.mubr.f32.gmra.mrb[0].mxu0 %v39
    %v156 = vpop.f32.mrb[0].mxu0
    %v157 = vadd.f32 %v77, %v156
    %v158 = vpop.f32.mrb[0].mxu0
    %v159 = vadd.f32 %v81, %v158
    %160 = vdwg.mxu0
    %161 = vst [vmem:[#allocation2] sm:$0xff] %v151
    %162 = vst [vmem:[#allocation2 + $0x8] sm:$0xff] %v153
    %163 = vst [vmem:[#allocation2 + $0x10] sm:$0xff] %v157
    %164 = vst [vmem:[#allocation2 + $0x18] sm:$0xff] %v159
    // Predicated region
    $region14: #{prenorm_linear.1} parent=1 // pred_check
      _
    $region15: #{prenorm_linear.1} parent=1 // pred_check_branch
      %166 = sbr.rel (0) target = $region17
    $region16: #{prenorm_linear.1} parent=1 // pred_region
      %s168 = ssub.s32 512, 512
      %169 = vsyncadd [#allocation3], %s168
      %s170 = sshll.u32 [#allocation2], 4
      %s171 = int_to_ptr.vmem [resolvable:$true] %s170
      %176 = dma.vmem_to_hbm [thread:$0]  %s171, 512, %s3, [#allocation3], 256, 256, 16
    $region17: #{prenorm_linear.1} parent=1 // pred_fallthru
      _
    // Predicated region
    $region18: #{prenorm_linear.1} parent=1 // pred_check
      _
    $region19: #{prenorm_linear.1} parent=1 // pred_check_branch
      %178 = sbr.rel (0) target = $region21
    $region20: #{prenorm_linear.1} parent=1 // pred_region
      %179 = dma.done [#allocation3], 512
    $region21: #{prenorm_linear.1} parent=1 // pred_fallthru
      _
    %180 = vsyncpa [#allocation3], 1

</llo_original>
